<compile_context>
chip_gen: v7x
topology: tpu7x:2x2x1
jax: 0.10.0
libtpu: 0.0.40
codegen_flags: <defaults>
</compile_context>

<pallas_src>
import numpy as np
import jax
import jax.numpy as jnp
from jax.experimental import pallas as pl
from jax.experimental.pallas import tpu as pltpu

DIM_Z1 = 12
DIM_Z2 = 12
LANE = 128        # TPU lane width
SUBLANE = 8       # TPU sublane count
MAX_BLOCK_B = 8192  # review: no benefit beyond this on any generation


def _sizes(dim_z1, dim_z2):
    return dim_z1 * 1, dim_z1 * dim_z2, dim_z2 * 1, dim_z2 * dim_z2


def _round_up(x, m):
    return (x + m - 1) // m * m


# ----------------------------------------------------------------------------
# Kernel: one fused matmul + bias add onto a lane-dense slab.
# ----------------------------------------------------------------------------
def cgn_kernel(x_ref, w_ref, b_ref, o_ref):
    # x_ref: (TB, K)  w_ref: (K, OUT_PAD)  b_ref: (1, OUT_PAD)  o_ref: (TB, OUT_PAD)
    acc = jnp.dot(x_ref[...], w_ref[...], preferred_element_type=jnp.float32)
    o_ref[...] = (acc + b_ref[...]).astype(o_ref.dtype)


# ----------------------------------------------------------------------------
# Parameter packing: (K, 312) weight + (312,) bias -> (K, 384) + (1, 384).
# Done once, outside the hot loop; extra output columns are zero.
# ----------------------------------------------------------------------------
def pack_params(weight_t, bias):
    in_dim, out_dim = weight_t.shape
    out_pad = _round_up(out_dim, LANE)
    w_padded = jnp.pad(weight_t, ((0, 0), (0, out_pad - out_dim)))          # (K, 384)
    b_padded = jnp.pad(bias, (0, out_pad - out_dim)).reshape(1, out_pad)    # (1, 384)
    return w_padded, b_padded


# ----------------------------------------------------------------------------
# Generation-aware VMEM budget / tile selection.
# ----------------------------------------------------------------------------
def _vmem_budget_bytes():
    try:
        phys = pltpu.get_tpu_info().vmem_capacity_bytes
    except Exception:
        phys = 64 << 20  # assume the smallest (v7x per-TC) if the query fails
    return min(phys * 3 // 4, phys - (16 << 20))


def _pick_tile_b(B, block_b, k, out_pad, out_bytes, budget):
    # Double-buffered x + out tiles dominate the pipeline footprint.
    per_row = 2 * (k * 4 + out_pad * out_bytes)
    fixed = 2 * (k * out_pad * 4 + out_pad * 4)  # resident weight + bias (tiny)
    max_rows = max(SUBLANE, ((budget - fixed) // per_row) // SUBLANE * SUBLANE)
    # Keep >= 2 grid steps when possible so the "parallel" batch axis spans
    # both TensorCores on v7x (no-op on v5e/v6e).
    half = _round_up(pl.cdiv(B, 2), SUBLANE)
    tb = max(SUBLANE,
             min(_round_up(block_b, SUBLANE), MAX_BLOCK_B, max_rows, half))
    return tb


# ----------------------------------------------------------------------------
# Preferred interface: return the lane-dense (B, 384) slab.
# ----------------------------------------------------------------------------
def cgn_forward_slab(x, w_padded, b_padded, *, block_b=4096,
                     out_dtype=jnp.float32):
    """x: (B, K) f32; w_padded: (K, out_pad); b_padded: (1, out_pad)."""
    B, k = x.shape
    k_w, out_pad = w_padded.shape
    assert k == k_w, (k, k_w)

    out_bytes = jnp.dtype(out_dtype).itemsize
    budget = _vmem_budget_bytes()
    tb = _pick_tile_b(B, block_b, k, out_pad, out_bytes, budget)
    grid = (pl.cdiv(B, tb),)

    # Pipeline footprint for this tile choice; only override the scoped-VMEM
    # limit when it might exceed v5e's 16 MiB default.
    per_step = (2 * (tb * k * 4 + tb * out_pad * out_bytes)
                + 2 * (k * out_pad * 4 + out_pad * 4))
    vmem_limit = None
    if per_step > (12 << 20):
        vmem_limit = int(min(per_step + (4 << 20), budget + (4 << 20)))

    cost = pl.CostEstimate(
        flops=2 * B * k * out_pad,
        transcendentals=0,
        bytes_accessed=(B * k * 4 + k * out_pad * 4 + out_pad * 4
                        + B * out_pad * out_bytes),
    )

    out = pl.pallas_call(
        cgn_kernel,
        out_shape=jax.ShapeDtypeStruct((B, out_pad), out_dtype),
        grid_spec=pltpu.PrefetchScalarGridSpec(
            num_scalar_prefetch=0,
            grid=grid,
            in_specs=[
                # x tile marches over the batch; last dim equals the full
                # array extent (12), satisfying the (8,128) rule.
                pl.BlockSpec((tb, k), lambda i: (i, 0)),
                # weight & bias: same block every step -> VMEM-resident.
                pl.BlockSpec((k, out_pad), lambda i: (0, 0)),
                pl.BlockSpec((1, out_pad), lambda i: (0, 0)),
            ],
            out_specs=pl.BlockSpec((tb, out_pad), lambda i: (i, 0)),
        ),
        compiler_params=pltpu.CompilerParams(
            dimension_semantics=("parallel",),   # shards batch across TCs on v7x
            vmem_limit_bytes=vmem_limit),
        cost_estimate=cost,
    )(x, w_padded, b_padded)
    return out


# ----------------------------------------------------------------------------
# Module-compatible interface: split the slab into [f1, g1, f2, g2].
# ----------------------------------------------------------------------------
def cgn_forward(x, w_padded, b_padded, dim_z1=DIM_Z1, dim_z2=DIM_Z2, **kwargs):
    B = x.shape[0]
    out = cgn_forward_slab(x, w_padded, b_padded, **kwargs)
    n_f1, n_g1, n_f2, n_g2 = _sizes(dim_z1, dim_z2)
    o1 = n_f1
    o2 = o1 + n_g1
    o3 = o2 + n_f2
    o4 = o3 + n_g2
    # TODO(synk): prefer consuming the (B, out_pad) slab directly inside the
    # downstream (fused) bilinear Koopman step; these non-128-aligned slices /
    # 12-wide-minor reshapes exist only to match the nn.Module return list and
    # cost more HBM traffic than the kernel itself.
    f1 = out[:, :o1].reshape(B, dim_z1, 1)
    g1 = out[:, o1:o2].reshape(B, dim_z1, dim_z2)
    f2 = out[:, o2:o3].reshape(B, dim_z2, 1)
    g2 = out[:, o3:o4].reshape(B, dim_z2, dim_z2)
    return [f1, g1, f2, g2]


# ----------------------------------------------------------------------------
# Init matching nn.Linear's default U(-1/sqrt(in), 1/sqrt(in)); weight stored
# pre-transposed as (in, out).
# ----------------------------------------------------------------------------
def init_params(key, dim_z1=DIM_Z1, dim_z2=DIM_Z2):
    n_f1, n_g1, n_f2, n_g2 = _sizes(dim_z1, dim_z2)
    out_dim = n_f1 + n_g1 + n_f2 + n_g2
    kw, kb = jax.random.split(key)
    bound = 1.0 / np.sqrt(dim_z1)
    weight_t = jax.random.uniform(kw, (dim_z1, out_dim), jnp.float32,
                                  minval=-bound, maxval=bound)
    bias = jax.random.uniform(kb, (out_dim,), jnp.float32,
                              minval=-bound, maxval=bound)
    return weight_t, bias


def reference_forward(x, weight_t, bias, dim_z1=DIM_Z1, dim_z2=DIM_Z2):
    out = x @ weight_t + bias[None, :]
    B = x.shape[0]
    n_f1, n_g1, n_f2, _ = _sizes(dim_z1, dim_z2)
    o1, o2, o3 = n_f1, n_f1 + n_g1, n_f1 + n_g1 + n_f2
    return [out[:, :o1].reshape(B, dim_z1, 1),
            out[:, o1:o2].reshape(B, dim_z1, dim_z2),
            out[:, o2:o3].reshape(B, dim_z2, 1),
            out[:, o3:].reshape(B, dim_z2, dim_z2)]


def _check(outs, refs, B, dim_z1=DIM_Z1, dim_z2=DIM_Z2, rtol=1e-5, atol=1e-5):
    expected = [(B, dim_z1, 1), (B, dim_z1, dim_z2),
                (B, dim_z2, 1), (B, dim_z2, dim_z2)]
    for o, r, s in zip(outs, refs, expected):
        assert o.shape == s, (o.shape, s)
        np.testing.assert_allclose(np.asarray(o, dtype=np.float32),
                                   np.asarray(r), rtol=rtol, atol=atol)


if __name__ == "__main__":
    key = jax.random.PRNGKey(0)
    k_x1, k_x2, k_x3, k_p = jax.random.split(key, 4)

    weight_t, bias = init_params(k_p)
    w_padded, b_padded = pack_params(weight_t, bias)

    # Small batch (single grid step).
    B1 = 8
    x1 = jax.random.normal(k_x1, (B1, DIM_Z1), dtype=jnp.float32)
    outs1 = jax.block_until_ready(cgn_forward(x1, w_padded, b_padded))
    _check(outs1, reference_forward(x1, weight_t, bias), B1)

    # Non-multiple-of-8 batch: exercises the ragged (masked) last block.
    B2 = 10
    x2 = jax.random.normal(k_x2, (B2, DIM_Z1), dtype=jnp.float32)
    outs2 = jax.block_until_ready(cgn_forward(x2, w_padded, b_padded))
    _check(outs2, reference_forward(x2, weight_t, bias), B2)

    # Module-default batch: tile is capped at ~B/2 so the parallel grid has
    # >= 2 steps (both TensorCores busy on v7x); also exercise a small block_b.
    B3 = 200
    x3 = jax.random.normal(k_x3, (B3, DIM_Z1), dtype=jnp.float32)
    outs3 = jax.block_until_ready(cgn_forward(x3, w_padded, b_padded))
    _check(outs3, reference_forward(x3, weight_t, bias), B3)
    outs3b = jax.block_until_ready(cgn_forward(x3, w_padded, b_padded,
                                               block_b=64))
    _check(outs3b, reference_forward(x3, weight_t, bias), B3)

    # Optional bf16 output path (halves the write-bound roofline); loose check.
    outs_bf16 = jax.block_until_ready(
        cgn_forward(x3, w_padded, b_padded, out_dtype=jnp.bfloat16))
    _check(outs_bf16, reference_forward(x3, weight_t, bias), B3,
           rtol=2e-2, atol=2e-2)

    print("KERNEL_OK")
</pallas_src>

<mosaic_0001>
module attributes {stable_mosaic.version = 11 : i64} {
  func.func @cgn_kernel(%arg0: i32, %arg1: memref<8x12xf32, #tpu.memory_space<vmem>>, %arg2: memref<12x384xf32, #tpu.memory_space<vmem>>, %arg3: memref<1x384xf32, #tpu.memory_space<vmem>>, %arg4: memref<8x384xf32, #tpu.memory_space<vmem>>) attributes {dimension_semantics = [#tpu.dimension_semantics<parallel>], iteration_bounds = array<i64: 1>, scalar_prefetch = 0 : i64, scratch_operands = 0 : i64, tpu.core_type = #tpu.core_type<tc>, window_params = [{transform_indices = @transform_0, window_bounds = array<i64: 8, 12>}, {pipeline_mode = #tpu.pipeline_mode<synchronous>, transform_indices = @transform_1, window_bounds = array<i64: 12, 384>}, {pipeline_mode = #tpu.pipeline_mode<synchronous>, transform_indices = @transform_2, window_bounds = array<i64: 1, 384>}, {transform_indices = @transform_3, window_bounds = array<i64: 8, 384>}]} {
    %c0 = arith.constant 0 : index
    %c0_0 = arith.constant 0 : index
    %0 = vector.load %arg1[%c0, %c0_0] : memref<8x12xf32, #tpu.memory_space<vmem>>, vector<8x12xf32>
    %c0_1 = arith.constant 0 : index
    %c0_2 = arith.constant 0 : index
    %1 = vector.load %arg2[%c0_1, %c0_2] : memref<12x384xf32, #tpu.memory_space<vmem>>, vector<12x384xf32>
    %cst = arith.constant dense<0.000000e+00> : vector<8x384xf32>
    %2 = tpu.matmul %0, %1, %cst {dimension_numbers = #tpu.dot_dimension_numbers<[1], [0], [0], [1], [0, 0, 1, 1], [], []>} : vector<8x12xf32>, vector<12x384xf32>, vector<8x384xf32> -> vector<8x384xf32>
    %c0_3 = arith.constant 0 : index
    %c0_4 = arith.constant 0 : index
    %3 = vector.load %arg3[%c0_3, %c0_4] : memref<1x384xf32, #tpu.memory_space<vmem>>, vector<1x384xf32>
    %4 = vector.broadcast %3 : vector<1x384xf32> to vector<8x384xf32>
    %5 = arith.addf %2, %4 : vector<8x384xf32>
    %c0_5 = arith.constant 0 : index
    %c0_6 = arith.constant 0 : index
    %6 = vector.load %arg4[%c0_5, %c0_6] : memref<8x384xf32, #tpu.memory_space<vmem>>, vector<8x384xf32>
    tpu.vector_store %arg4[%c0_5, %c0_6], %5 {strides = array<i32>} : memref<8x384xf32, #tpu.memory_space<vmem>>, vector<8x384xf32>,
    return
  }
  func.func @transform_0(%arg0: i32) -> (i32, i32) {
    %c0_i32 = arith.constant 0 : i32
    %c0_i32_0 = arith.constant 0 : i32
    return %arg0, %c0_i32 : i32, i32
  }
  func.func @transform_1(%arg0: i32) -> (i32, i32) {
    %c0_i32 = arith.constant 0 : i32
    %c0_i32_0 = arith.constant 0 : i32
    %c0_i32_1 = arith.constant 0 : i32
    return %c0_i32, %c0_i32_0 : i32, i32
  }
  func.func @transform_2(%arg0: i32) -> (i32, i32) {
    %c0_i32 = arith.constant 0 : i32
    %c0_i32_0 = arith.constant 0 : i32
    %c0_i32_1 = arith.constant 0 : i32
    return %c0_i32, %c0_i32_0 : i32, i32
  }
  func.func @transform_3(%arg0: i32) -> (i32, i32) {
    %c0_i32 = arith.constant 0 : i32
    %c0_i32_0 = arith.constant 0 : i32
    return %arg0, %c0_i32 : i32, i32
  }
}

</mosaic_0001>

<llo_original>
// kernel: tpu_custom_call.1
$region0: #{tpu_custom_call.1}
  #allocation0 [shape = 'u32[]', space=smem, size = 0x4, offset = 0x4, fixed_abs, tag = 'smem constant byte address 0x4 - core index']
  #allocation1 [shape = 'u32[144,128]{1,0:T(1,128)}', space=vmem, size = 0x12000, scoped, tag = 'internal scratch']
  %s0 = inlined_call_operand.hbm [shape: f32[8,12], index: 0, kind: input, shape index: {}]
  %s1 = inlined_call_operand.hbm [shape: f32[12,384], index: 1, kind: input, shape index: {}]
  %s2 = inlined_call_operand.vmem [shape: f32[1,384], index: 2, kind: input, shape index: {}]
  %s3 = inlined_call_operand.hbm [shape: f32[8,384], index: 3, kind: output, shape index: {}]
  %s4 = sld [smem:[#allocation0]]
  $region30: #{tpu_custom_call.1} parent=0
    _
  %s6 = ssub.s32 1, %s4
  %s7 = scalar_select 0, %s6, %s4
  $region1: #{tpu_custom_call.1} parent=0
    #allocation2 [shape = 'u8[4096]{0}', space=vmem, size = 0x1000, scoped, tag = 'input window, operand 0, single buffered']
    #allocation3 [shape = 's32[1]{0}', space=sflag, size = 0x4, scoped, tag = 'scoped memory for tpu_custom_call.1']
    #allocation4 [shape = 's32[1]{0}', space=sflag, size = 0x4, scoped, tag = 'scoped memory for tpu_custom_call.1']
    #allocation5 [shape = 'u8[24576]{0}', space=vmem, size = 0x6000, scoped, tag = 'input window, operand 1, single buffered']
    #allocation6 [shape = 's32[1]{0}', space=sflag, size = 0x4, scoped, tag = 'scoped memory for tpu_custom_call.1']
    #allocation7 [shape = 'u8[12288]{0}', space=vmem, size = 0x3000, scoped, tag = 'output window, operand 0, single buffered']
    %8 = vsyncpa [#allocation3], 0
    %9 = vsyncpa [#allocation6], 0
    %10 = vsyncpa [#allocation4], 0
    // Predicated region
    $region2: #{tpu_custom_call.1} parent=1 // pred_check
      _
    $region3: #{tpu_custom_call.1} parent=1 // pred_check_branch
      %12 = sbr.rel (0) target = $region5
    $region4: #{tpu_custom_call.1} parent=1 // pred_region
      %s14 = ssub.s32 128, 128
      %15 = vsyncadd [#allocation3], %s14
      %s17 = sshll.u32 [#allocation2], 4
      %s18 = int_to_ptr.vmem [resolvable:$true] %s17
      %20 = dma.hbm_to_vmem [thread:$0]  %s0, 128, %s18, [#allocation3]
    $region5: #{tpu_custom_call.1} parent=1 // pred_fallthru
      _
    // Predicated region
    $region6: #{tpu_custom_call.1} parent=1 // pred_check
      _
    $region7: #{tpu_custom_call.1} parent=1 // pred_check_branch
      %22 = sbr.rel (0) target = $region9
    $region8: #{tpu_custom_call.1} parent=1 // pred_region
      %s24 = ssub.s32 768, 768
      %25 = vsyncadd [#allocation6], %s24
      %s26 = sshll.u32 [#allocation5], 4
      %s27 = int_to_ptr.vmem [resolvable:$true] %s26
      %32 = dma.hbm_to_vmem [thread:$0]  %s1, 768, %s27, [#allocation6], 384, 384, 24
    $region9: #{tpu_custom_call.1} parent=1 // pred_fallthru
      _
    // Predicated region
    $region10: #{tpu_custom_call.1} parent=1 // pred_check
      _
    $region11: #{tpu_custom_call.1} parent=1 // pred_check_branch
      %34 = sbr.rel (0) target = $region13
    $region12: #{tpu_custom_call.1} parent=1 // pred_region
      _
    $region13: #{tpu_custom_call.1} parent=1 // pred_fallthru
      _
    // Predicated region
    $region14: #{tpu_custom_call.1} parent=1 // pred_check
      _
    $region15: #{tpu_custom_call.1} parent=1 // pred_check_branch
      %36 = sbr.rel (0) target = $region17
    $region16: #{tpu_custom_call.1} parent=1 // pred_region
      %37 = dma.done [#allocation3], 128
    $region17: #{tpu_custom_call.1} parent=1 // pred_fallthru
      _
    // Predicated region
    $region18: #{tpu_custom_call.1} parent=1 // pred_check
      _
    $region19: #{tpu_custom_call.1} parent=1 // pred_check_branch
      %39 = sbr.rel (0) target = $region21
    $region20: #{tpu_custom_call.1} parent=1 // pred_region
      %40 = dma.done [#allocation6], 768
    $region21: #{tpu_custom_call.1} parent=1 // pred_fallthru
      _
    %v41 = vld [vmem:[#allocation2] sm:$0xff]
    %v42 = vld [vmem:[#allocation5] sm:$0xff]
    %v43 = vld [vmem:[#allocation5 + $0x8] sm:$0xff]
    %v44 = vld [vmem:[#allocation5 + $0x10] sm:$0xff]
    %v45 = vld [vmem:[#allocation5 + $0x18] sm:$0xf]
    %v46 = vld [vmem:[#allocation5 + $0x20] sm:$0xf]
    %v47 = vld [vmem:[#allocation5 + $0x28] sm:$0xf]
    %v48 = vld [vmem:[%s2] sm:$0x7]
    %v50 = vlaneseq
    %v51 = vshrl.u32 %v50, 7
    %v52 = vsub.s32 0, %v51
    %v53 = vrot.slane %v48, %v52
    %v54 = vlaneseq
    %v55 = vshrl.u32 %v54, 7
    %v56 = vsub.s32 1, %v55
    %v57 = vrot.slane %v48, %v56
    %v58 = vlaneseq
    %v59 = vshrl.u32 %v58, 7
    %v60 = vsub.s32 2, %v59
    %v61 = vrot.slane %v48, %v60
    %vm65 = vcmask 97280
    %v67 = vsel %vm65, %v41, 0
    %vm69 = vcmask 1043456
    %v71 = vsel %vm69, %v45, 0
    %v74 = vsel %vm69, %v46, 0
    %v77 = vsel %vm69, %v47, 0
    %79 = vmatprep.subr.mxu0 %v43
    %80 = vmatpush1.msra.mxu0 %v42
    %81 = vmatprep.subr.mxu0 %v74
    %82 = vmatpush1.msra.mxu0 %v71
    %83 = vmatprep.subr.mxu0 0.0
    %84 = vmatpush1.msra.mxu0 0.0
    %85 = vmatprep.subr.mxu0 0.0
    %86 = vmatpush1.msra.mxu0 0.0
    %87 = vmatprep.subr.mxu0 0.0
    %88 = vmatpush1.msra.mxu0 0.0
    %89 = vmatprep.subr.mxu0 0.0
    %90 = vmatpush1.msra.mxu0 0.0
    %91 = vmatprep.subr.mxu0 0.0
    %92 = vmatpush1.msra.mxu0 0.0
    %93 = vmatprep.subr.mxu0 0.0
    %94 = vmatpush1.msra.mxu0 0.0
    %95 = vmatprep.subr.mxu0 0.0
    %96 = vmatpush1.msra.mxu0 0.0
    %97 = vmatprep.subr.mxu0 0.0
    %98 = vmatpush1.msra.mxu0 0.0
    %99 = vmatprep.subr.mxu0 0.0
    %100 = vmatpush1.msra.mxu0 0.0
    %101 = vmatprep.subr.mxu0 0.0
    %102 = vmatpush1.msra.mxu0 0.0
    %103 = vmatprep.subr.mxu0 0.0
    %104 = vmatpush1.msra.mxu0 0.0
    %105 = vmatprep.subr.mxu0 0.0
    %106 = vmatpush1.msra.mxu0 0.0
    %107 = vmatprep.subr.mxu0 0.0
    %108 = vmatpush1.msra.mxu0 0.0
    %109 = vmatprep.subr.mxu0 0.0
    %110 = vmatpush1.msra.mxu0 0.0
    %111 = vmatprep.subr.mxu0 0.0
    %112 = vmatpush1.msra.mxu0 0.0
    %113 = vmatprep.subr.mxu0 0.0
    %114 = vmatpush1.msra.mxu0 0.0
    %115 = vmatprep.subr.mxu0 0.0
    %116 = vmatpush1.msra.mxu0 0.0
    %117 = vmatprep.subr.mxu0 0.0
    %118 = vmatpush1.msra.mxu0 0.0
    %119 = vmatprep.subr.mxu0 0.0
    %120 = vmatpush1.msra.mxu0 0.0
    %121 = vmatprep.subr.mxu0 0.0
    %122 = vmatpush1.msra.mxu0 0.0
    %123 = vmatprep.subr.mxu0 0.0
    %124 = vmatpush1.msra.mxu0 0.0
    %125 = vmatprep.subr.mxu0 0.0
    %126 = vmatpush1.msra.mxu0 0.0
    %127 = vmatprep.subr.mxu0 0.0
    %128 = vmatpush1.msra.mxu0 0.0
    %129 = vmatprep.subr.mxu0 0.0
    %130 = vmatpush1.msra.mxu0 0.0
    %131 = vmatprep.subr.mxu0 0.0
    %132 = vmatpush1.msra.mxu0 0.0
    %133 = vmatprep.subr.mxu0 0.0
    %134 = vmatpush1.msra.mxu0 0.0
    %135 = vmatprep.subr.mxu0 0.0
    %136 = vmatpush1.msra.mxu0 0.0
    %137 = vmatprep.subr.mxu0 0.0
    %138 = vmatpush1.msra.mxu0 0.0
    %139 = vmatprep.subr.mxu0 0.0
    %140 = vmatpush1.msra.mxu0 0.0
    %141 = vmatprep.subr.mxu0 0.0
    %142 = vmatpush1.msra.mxu0 0.0
    %143 = vmatprep.mubr.f32.mxu0 0.0
    %144 = vmatmul.mubr.f32.gmra.mrb[0].mxu0 %v67
    %v145 = vpop.f32.mrb[0].mxu0
    %v146 = vadd.f32 %v53, %v145
    %v147 = vpop.f32.mrb[0].mxu0
    %v148 = vadd.f32 %v57, %v147
    %149 = vdwg.mxu0
    %150 = vmatprep.subr.mxu0 0.0
    %151 = vmatpush1.msra.mxu0 %v44
    %152 = vmatprep.subr.mxu0 0.0
    %153 = vmatpush1.msra.mxu0 %v77
    %154 = vmatprep.subr.mxu0 0.0
    %155 = vmatpush1.msra.mxu0 0.0
    %156 = vmatprep.subr.mxu0 0.0
    %157 = vmatpush1.msra.mxu0 0.0
    %158 = vmatprep.subr.mxu0 0.0
    %159 = vmatpush1.msra.mxu0 0.0
    %160 = vmatprep.subr.mxu0 0.0
    %161 = vmatpush1.msra.mxu0 0.0
    %162 = vmatprep.subr.mxu0 0.0
    %163 = vmatpush1.msra.mxu0 0.0
    %164 = vmatprep.subr.mxu0 0.0
    %165 = vmatpush1.msra.mxu0 0.0
    %166 = vmatprep.subr.mxu0 0.0
    %167 = vmatpush1.msra.mxu0 0.0
    %168 = vmatprep.subr.mxu0 0.0
    %169 = vmatpush1.msra.mxu0 0.0
    %170 = vmatprep.subr.mxu0 0.0
    %171 = vmatpush1.msra.mxu0 0.0
    %172 = vmatprep.subr.mxu0 0.0
    %173 = vmatpush1.msra.mxu0 0.0
    %174 = vmatprep.subr.mxu0 0.0
    %175 = vmatpush1.msra.mxu0 0.0
    %176 = vmatprep.subr.mxu0 0.0
    %177 = vmatpush1.msra.mxu0 0.0
    %178 = vmatprep.subr.mxu0 0.0
    %179 = vmatpush1.msra.mxu0 0.0
    %180 = vmatprep.subr.mxu0 0.0
    %181 = vmatpush1.msra.mxu0 0.0
    %182 = vmatprep.subr.mxu0 0.0
    %183 = vmatpush1.msra.mxu0 0.0
    %184 = vmatprep.subr.mxu0 0.0
    %185 = vmatpush1.msra.mxu0 0.0
    %186 = vmatprep.subr.mxu0 0.0
    %187 = vmatpush1.msra.mxu0 0.0
    %188 = vmatprep.subr.mxu0 0.0
    %189 = vmatpush1.msra.mxu0 0.0
    %190 = vmatprep.subr.mxu0 0.0
    %191 = vmatpush1.msra.mxu0 0.0
    %192 = vmatprep.subr.mxu0 0.0
    %193 = vmatpush1.msra.mxu0 0.0
    %194 = vmatprep.subr.mxu0 0.0
    %195 = vmatpush1.msra.mxu0 0.0
    %196 = vmatprep.subr.mxu0 0.0
    %197 = vmatpush1.msra.mxu0 0.0
    %198 = vmatprep.subr.mxu0 0.0
    %199 = vmatpush1.msra.mxu0 0.0
    %200 = vmatprep.subr.mxu0 0.0
    %201 = vmatpush1.msra.mxu0 0.0
    %202 = vmatprep.subr.mxu0 0.0
    %203 = vmatpush1.msra.mxu0 0.0
    %204 = vmatprep.subr.mxu0 0.0
    %205 = vmatpush1.msra.mxu0 0.0
    %206 = vmatprep.subr.mxu0 0.0
    %207 = vmatpush1.msra.mxu0 0.0
    %208 = vmatprep.subr.mxu0 0.0
    %209 = vmatpush1.msra.mxu0 0.0
    %210 = vmatprep.subr.mxu0 0.0
    %211 = vmatpush1.msra.mxu0 0.0
    %212 = vmatprep.subr.mxu0 0.0
    %213 = vmatpush1.msra.mxu0 0.0
    %214 = vmatprep.mubr.f32.mxu0 0.0
    %215 = vmatmul.mubr.f32.gmra.mrb[0].mxu0 %v67
    %v216 = vpop.f32.mrb[0].mxu0
    %v217 = vadd.f32 %v61, %v216
    %v218 = vpop.f32.mrb[0].mxu0
    %219 = vdwg.mxu0
    %220 = vst [vmem:[#allocation7] sm:$0xff] %v146
    %221 = vst [vmem:[#allocation7 + $0x8] sm:$0xff] %v148
    %222 = vst [vmem:[#allocation7 + $0x10] sm:$0xff] %v217
    // Predicated region
    $region22: #{tpu_custom_call.1} parent=1 // pred_check
      _
    $region23: #{tpu_custom_call.1} parent=1 // pred_check_branch
      %224 = sbr.rel (0) target = $region25
    $region24: #{tpu_custom_call.1} parent=1 // pred_region
      %s226 = ssub.s32 384, 384
      %227 = vsyncadd [#allocation4], %s226
      %s229 = sshll.u32 [#allocation7], 4
      %s230 = int_to_ptr.vmem [resolvable:$true] %s229
      %232 = dma.vmem_to_hbm [thread:$0]  %s230, 384, %s3, [#allocation4]
    $region25: #{tpu_custom_call.1} parent=1 // pred_fallthru
      _
    // Predicated region
    $region26: #{tpu_custom_call.1} parent=1 // pred_check
      _
    $region27: #{tpu_custom_call.1} parent=1 // pred_check_branch
      %234 = sbr.rel (0) target = $region29
    $region28: #{tpu_custom_call.1} parent=1 // pred_region
      %235 = dma.done [#allocation4], 384
    $region29: #{tpu_custom_call.1} parent=1 // pred_fallthru
      _
    %236 = vsyncpa [#allocation3], 1
    %237 = vsyncpa [#allocation6], 1
    %238 = vsyncpa [#allocation4], 1

</llo_original>
